<compile_context>
chip_gen: v6e
topology: v6e:2x2x1
jax: 0.10.0
libtpu: 0.0.40
codegen_flags: <defaults>
</compile_context>

<pallas_src>
import jax
import jax.numpy as jnp
from jax.experimental import pallas as pl
from jax.experimental.pallas import tpu as pltpu


def _mhca_kernel(x_ref, wkq_t_ref, pool_e_ref, wv_t_ref, bv_ref,
                 wo_t_ref, bo_ref, out_ref):
    """One grid step == TB batch elements.  Everything stays in VMEM."""
    x = x_ref[...]                                   # (S, TB, H), rows = (s, b)
    S, TB, H = x.shape
    mxu_dtype = wv_t_ref.dtype

    x_flat = x.reshape(S * TB, H).astype(mxu_dtype)  # free leading-dim merge

    # Value projection: one MXU matmul, f32 accumulation, (in, out) weights.
    v = jnp.dot(x_flat, wv_t_ref[...], preferred_element_type=jnp.float32) \
        + bv_ref[...]                                # (S*TB, H) f32

    # Scores for every (head, query) pair at once.  The key projection is
    # pre-fused into wkq_t = Wk^T @ qexp_t (scale 1/sqrt(hd) folded in);
    # the key bias is a constant along the softmax axis and is dropped (exact).
    scores = jnp.dot(x_flat, wkq_t_ref[...],
                     preferred_element_type=jnp.float32)     # (S*TB, nh*Qn)

    # Softmax over the sequence axis, per batch element (f32 throughout).
    QH = scores.shape[-1]
    s3 = scores.reshape(S, TB, QH)
    s3 = s3 - jnp.max(s3, axis=0, keepdims=True)
    p = jnp.exp(s3)
    p = p * pl.reciprocal(jnp.sum(p, axis=0, keepdims=True), approx=True)

    # Mean over the Qn queries + broadcast each head's weight across its hd
    # output columns, as one matmul:  pool_e[h*Qn + q, h*hd + d] = 1/Qn.
    p_exp = jnp.dot(p.reshape(S * TB, QH).astype(mxu_dtype), pool_e_ref[...],
                    preferred_element_type=jnp.float32)      # (S*TB, H)

    # Pooled attention output per batch element (heads already merged):
    #   attn_bar[b, c] = sum_s mean_q(p)[s, b, head(c)] * v[(s,b), c]
    attn_bar = jnp.sum((p_exp * v).reshape(S, TB, H), axis=0)  # (TB, H)

    out = jnp.dot(attn_bar.astype(mxu_dtype), wo_t_ref[...],
                  preferred_element_type=jnp.float32) + bo_ref[...]
    out_ref[...] = out.astype(out_ref.dtype)


def _pick_batch_tile(batch, max_tb=32):
    """Batch-tile: multiple of 8 (sublane constraint) dividing `batch`, capped
    so that there are >=2 grid steps when possible (keeps both v7x TCs busy).
    Falls back to the full batch (block == full dim is always legal)."""
    if batch <= 8:
        return batch
    limit = min(max_tb, max(8, batch // 2))
    best = None
    for tb in range(8, limit + 1, 8):
        if batch % tb == 0:
            best = tb
    return best if best is not None else batch


def mhca_forward(x_sbh, params, num_heads, *, batch_tile=None,
                 compute_dtype=jnp.bfloat16):
    """x_sbh: (seq, batch, hidden) float32 (module's seq-first convention).
    Returns (batch, hidden) float32."""
    S, B, H = x_sbh.shape
    assert H % num_heads == 0, "hidden_size must be divisible by num_heads"
    hd = H // num_heads
    qtok = params['query_tokens']                    # (Qn, H)
    Qn = qtok.shape[0]
    QH = num_heads * Qn

    TB = batch_tile if batch_tile is not None else _pick_batch_tile(B)
    assert B % TB == 0, (B, TB)

    # ---- grid-invariant operands, precomputed once outside the kernel ----
    # qexp_t: (H, nh*Qn) block-diagonal expanded queries with 1/sqrt(hd) folded.
    # wkq_t : Wk^T @ qexp_t  -> the key projection fused into the score matmul.
    # pool_e: (nh*Qn, H) mean-over-queries + per-head-broadcast matrix.
    head_of_col = jnp.arange(H) // hd                          # (H,)
    head_of_row = jnp.repeat(jnp.arange(num_heads), Qn)        # (QH,)
    mask = (head_of_row[:, None] == head_of_col[None, :]).astype(jnp.float32)
    qexp = jnp.tile(qtok, (num_heads, 1)) * mask * (1.0 / (hd ** 0.5))
    qexp_t = qexp.T                                            # (H, QH) f32
    wkq_t = (params['wk'].T.astype(jnp.float32) @ qexp_t).astype(compute_dtype)
    pool_e = (mask / Qn).astype(compute_dtype)                 # (QH, H)

    # Weights pre-transposed to (in, out) layout and cast to the MXU dtype;
    # biases stay f32 and are added after the f32-accumulated matmuls.
    # (bk intentionally unused: constant shift along the softmax axis.)
    wv_t = params['wv'].T.astype(compute_dtype)
    wo_t = params['wo'].T.astype(compute_dtype)
    bv = params['bv'].reshape(1, H).astype(jnp.float32)
    bo = params['bo'].reshape(1, H).astype(jnp.float32)

    const2d = lambda b: (0, 0)

    return pl.pallas_call(
        _mhca_kernel,
        out_shape=jax.ShapeDtypeStruct((B, H), jnp.float32),
        grid_spec=pltpu.PrefetchScalarGridSpec(
            num_scalar_prefetch=0,
            grid=(B // TB,),
            in_specs=[
                # x in its native (S, B, H) layout; only the batch dim is tiled.
                pl.BlockSpec((S, TB, H), lambda b: (0, b, 0)),
                pl.BlockSpec((H, QH), const2d),   # Wk^T @ expanded queries
                pl.BlockSpec((QH, H), const2d),   # query-pool matrix
                pl.BlockSpec((H, H), const2d),    # Wv^T
                pl.BlockSpec((1, H), const2d),    # bv
                pl.BlockSpec((H, H), const2d),    # Wo^T
                pl.BlockSpec((1, H), const2d),    # bo
            ],
            out_specs=pl.BlockSpec((TB, H), lambda b: (b, 0)),
        ),
        compiler_params=pltpu.CompilerParams(
            dimension_semantics=("parallel",)),
    )(x_sbh, wkq_t, pool_e, wv_t, bv, wo_t, bo)


def mhca_reference(x_sbh, params, num_heads):
    """Pure-JAX f32 reference mirroring the PyTorch forward (incl. key bias)."""
    S, B, H = x_sbh.shape
    hd = H // num_heads
    qtok = params['query_tokens']                               # (Qn, H)
    Qn = qtok.shape[0]

    key = jnp.einsum('sbh,oh->sbo', x_sbh, params['wk']) + params['bk']
    val = jnp.einsum('sbh,oh->sbo', x_sbh, params['wv']) + params['bv']
    query = jnp.broadcast_to(qtok[:, None, :], (Qn, B, H))

    def split(t):   # (T, B, H) -> (B*nh, T, hd), PyTorch head ordering
        T = t.shape[0]
        return t.reshape(T, B * num_heads, hd).transpose(1, 0, 2)

    q, k, v = split(query), split(key), split(val)
    w = jax.nn.softmax(jnp.einsum('btd,bsd->bts', q, k) / (hd ** 0.5), axis=-1)
    o = jnp.einsum('bts,bsd->btd', w, v)                        # (B*nh, Qn, hd)
    o = o.transpose(1, 0, 2).reshape(Qn, B, H)
    o = jnp.einsum('qbh,oh->qbo', o, params['wo']) + params['bo']
    return jnp.mean(o, axis=0)                                  # (B, H)


if __name__ == "__main__":
    # small, module-consistent shapes
    hidden_size = 32
    num_heads = 8
    num_queries = 16
    seq_len = 8
    batch = 16          # -> batch tile 8, grid of 2 parallel steps

    root = jax.random.PRNGKey(0)
    keys = jax.random.split(root, 8)

    params = {
        'query_tokens': jax.random.normal(keys[0], (num_queries, hidden_size),
                                          jnp.float32),
        'wk': jax.random.normal(keys[1], (hidden_size, hidden_size), jnp.float32) * 0.1,
        'bk': jax.random.normal(keys[2], (hidden_size,), jnp.float32) * 0.1,
        'wv': jax.random.normal(keys[3], (hidden_size, hidden_size), jnp.float32) * 0.1,
        'bv': jax.random.normal(keys[4], (hidden_size,), jnp.float32) * 0.1,
        'wo': jax.random.normal(keys[5], (hidden_size, hidden_size), jnp.float32) * 0.1,
        'bo': jax.random.normal(keys[6], (hidden_size,), jnp.float32) * 0.1,
    }

    x = jax.random.normal(keys[7], (seq_len, batch, hidden_size), jnp.float32)

    out = jax.block_until_ready(mhca_forward(x, params, num_heads))
    ref = jax.block_until_ready(mhca_reference(x, params, num_heads))

    assert out.shape == (batch, hidden_size), out.shape
    max_err = float(jnp.max(jnp.abs(out - ref)))
    assert jnp.allclose(out, ref, atol=2e-2, rtol=2e-2), max_err

    print("KERNEL_OK")
</pallas_src>

<mosaic_0001>
module attributes {stable_mosaic.version = 11 : i64} {
  func.func @_mhca_kernel(%arg0: i32, %arg1: memref<8x8x32xf32, #tpu.memory_space<vmem>>, %arg2: memref<32x128xbf16, #tpu.memory_space<vmem>>, %arg3: memref<128x32xbf16, #tpu.memory_space<vmem>>, %arg4: memref<32x32xbf16, #tpu.memory_space<vmem>>, %arg5: memref<1x32xf32, #tpu.memory_space<vmem>>, %arg6: memref<32x32xbf16, #tpu.memory_space<vmem>>, %arg7: memref<1x32xf32, #tpu.memory_space<vmem>>, %arg8: memref<8x32xf32, #tpu.memory_space<vmem>>) attributes {dimension_semantics = [#tpu.dimension_semantics<parallel>], iteration_bounds = array<i64: 2>, scalar_prefetch = 0 : i64, scratch_operands = 0 : i64, tpu.core_type = #tpu.core_type<tc>, window_params = [{transform_indices = @transform_0, window_bounds = array<i64: 8, 8, 32>}, {pipeline_mode = #tpu.pipeline_mode<synchronous>, transform_indices = @transform_1, window_bounds = array<i64: 32, 128>}, {pipeline_mode = #tpu.pipeline_mode<synchronous>, transform_indices = @transform_2, window_bounds = array<i64: 128, 32>}, {pipeline_mode = #tpu.pipeline_mode<synchronous>, transform_indices = @transform_3, window_bounds = array<i64: 32, 32>}, {pipeline_mode = #tpu.pipeline_mode<synchronous>, transform_indices = @transform_4, window_bounds = array<i64: 1, 32>}, {pipeline_mode = #tpu.pipeline_mode<synchronous>, transform_indices = @transform_5, window_bounds = array<i64: 32, 32>}, {pipeline_mode = #tpu.pipeline_mode<synchronous>, transform_indices = @transform_6, window_bounds = array<i64: 1, 32>}, {transform_indices = @transform_7, window_bounds = array<i64: 8, 32>}]} {
    %c0 = arith.constant 0 : index
    %c0_0 = arith.constant 0 : index
    %c0_1 = arith.constant 0 : index
    %0 = vector.load %arg1[%c0, %c0_0, %c0_1] : memref<8x8x32xf32, #tpu.memory_space<vmem>>, vector<8x8x32xf32>
    %1 = vector.shape_cast %0 : vector<8x8x32xf32> to vector<64x32xf32>
    %2 = arith.truncf %1 : vector<64x32xf32> to vector<64x32xbf16>
    %c0_2 = arith.constant 0 : index
    %c0_3 = arith.constant 0 : index
    %3 = vector.load %arg4[%c0_2, %c0_3] : memref<32x32xbf16, #tpu.memory_space<vmem>>, vector<32x32xbf16>
    %cst = arith.constant dense<0.000000e+00> : vector<64x32xf32>
    %4 = tpu.matmul %2, %3, %cst {dimension_numbers = #tpu.dot_dimension_numbers<[1], [0], [0], [1], [0, 0, 1, 1], [], []>} : vector<64x32xbf16>, vector<32x32xbf16>, vector<64x32xf32> -> vector<64x32xf32>
    %c0_4 = arith.constant 0 : index
    %c0_5 = arith.constant 0 : index
    %5 = vector.load %arg5[%c0_4, %c0_5] : memref<1x32xf32, #tpu.memory_space<vmem>>, vector<1x32xf32>
    %6 = vector.broadcast %5 : vector<1x32xf32> to vector<64x32xf32>
    %7 = arith.addf %4, %6 : vector<64x32xf32>
    %c0_6 = arith.constant 0 : index
    %c0_7 = arith.constant 0 : index
    %8 = vector.load %arg2[%c0_6, %c0_7] : memref<32x128xbf16, #tpu.memory_space<vmem>>, vector<32x128xbf16>
    %cst_8 = arith.constant dense<0.000000e+00> : vector<64x128xf32>
    %9 = tpu.matmul %2, %8, %cst_8 {dimension_numbers = #tpu.dot_dimension_numbers<[1], [0], [0], [1], [0, 0, 1, 1], [], []>} : vector<64x32xbf16>, vector<32x128xbf16>, vector<64x128xf32> -> vector<64x128xf32>
    %10 = vector.shape_cast %9 : vector<64x128xf32> to vector<8x8x128xf32>
    %cst_9 = arith.constant dense<0xFF800000> : vector<8x128xf32>
    %11 = vector.multi_reduction <maximumf>, %10, %cst_9 [0] : vector<8x8x128xf32> to vector<8x128xf32>
    %12 = vector.shape_cast %11 : vector<8x128xf32> to vector<1x8x128xf32>
    %13 = vector.broadcast %12 : vector<1x8x128xf32> to vector<8x8x128xf32>
    %14 = arith.subf %10, %13 : vector<8x8x128xf32>
    %15 = math.exp %14 : vector<8x8x128xf32>
    %cst_10 = arith.constant dense<0.000000e+00> : vector<8x128xf32>
    %16 = vector.multi_reduction <add>, %15, %cst_10 [0] : vector<8x8x128xf32> to vector<8x128xf32>
    %17 = vector.shape_cast %16 : vector<8x128xf32> to vector<1x8x128xf32>
    %18 = tpu.reciprocal %17 {approx = true} : vector<1x8x128xf32> -> vector<1x8x128xf32>
    %19 = vector.broadcast %18 : vector<1x8x128xf32> to vector<8x8x128xf32>
    %20 = arith.mulf %15, %19 : vector<8x8x128xf32>
    %21 = vector.shape_cast %20 : vector<8x8x128xf32> to vector<64x128xf32>
    %22 = arith.truncf %21 : vector<64x128xf32> to vector<64x128xbf16>
    %c0_11 = arith.constant 0 : index
    %c0_12 = arith.constant 0 : index
    %23 = vector.load %arg3[%c0_11, %c0_12] : memref<128x32xbf16, #tpu.memory_space<vmem>>, vector<128x32xbf16>
    %cst_13 = arith.constant dense<0.000000e+00> : vector<64x32xf32>
    %24 = tpu.matmul %22, %23, %cst_13 {dimension_numbers = #tpu.dot_dimension_numbers<[1], [0], [0], [1], [0, 0, 1, 1], [], []>} : vector<64x128xbf16>, vector<128x32xbf16>, vector<64x32xf32> -> vector<64x32xf32>
    %25 = arith.mulf %24, %7 : vector<64x32xf32>
    %26 = vector.shape_cast %25 : vector<64x32xf32> to vector<8x8x32xf32>
    %cst_14 = arith.constant dense<0.000000e+00> : vector<8x32xf32>
    %27 = vector.multi_reduction <add>, %26, %cst_14 [0] : vector<8x8x32xf32> to vector<8x32xf32>
    %28 = arith.truncf %27 : vector<8x32xf32> to vector<8x32xbf16>
    %c0_15 = arith.constant 0 : index
    %c0_16 = arith.constant 0 : index
    %29 = vector.load %arg6[%c0_15, %c0_16] : memref<32x32xbf16, #tpu.memory_space<vmem>>, vector<32x32xbf16>
    %cst_17 = arith.constant dense<0.000000e+00> : vector<8x32xf32>
    %30 = tpu.matmul %28, %29, %cst_17 {dimension_numbers = #tpu.dot_dimension_numbers<[1], [0], [0], [1], [0, 0, 1, 1], [], []>} : vector<8x32xbf16>, vector<32x32xbf16>, vector<8x32xf32> -> vector<8x32xf32>
    %c0_18 = arith.constant 0 : index
    %c0_19 = arith.constant 0 : index
    %31 = vector.load %arg7[%c0_18, %c0_19] : memref<1x32xf32, #tpu.memory_space<vmem>>, vector<1x32xf32>
    %32 = vector.broadcast %31 : vector<1x32xf32> to vector<8x32xf32>
    %33 = arith.addf %30, %32 : vector<8x32xf32>
    %c0_20 = arith.constant 0 : index
    %c0_21 = arith.constant 0 : index
    %34 = vector.load %arg8[%c0_20, %c0_21] : memref<8x32xf32, #tpu.memory_space<vmem>>, vector<8x32xf32>
    tpu.vector_store %arg8[%c0_20, %c0_21], %33 {strides = array<i32>} : memref<8x32xf32, #tpu.memory_space<vmem>>, vector<8x32xf32>,
    return
  }
  func.func @transform_0(%arg0: i32) -> (i32, i32, i32) {
    %c0_i32 = arith.constant 0 : i32
    %c0_i32_0 = arith.constant 0 : i32
    %c0_i32_1 = arith.constant 0 : i32
    return %c0_i32, %arg0, %c0_i32_0 : i32, i32, i32
  }
  func.func @transform_1(%arg0: i32) -> (i32, i32) {
    %c0_i32 = arith.constant 0 : i32
    %c0_i32_0 = arith.constant 0 : i32
    %c0_i32_1 = arith.constant 0 : i32
    return %c0_i32, %c0_i32_0 : i32, i32
  }
  func.func @transform_2(%arg0: i32) -> (i32, i32) {
    %c0_i32 = arith.constant 0 : i32
    %c0_i32_0 = arith.constant 0 : i32
    %c0_i32_1 = arith.constant 0 : i32
    return %c0_i32, %c0_i32_0 : i32, i32
  }
  func.func @transform_3(%arg0: i32) -> (i32, i32) {
    %c0_i32 = arith.constant 0 : i32
    %c0_i32_0 = arith.constant 0 : i32
    %c0_i32_1 = arith.constant 0 : i32
    return %c0_i32, %c0_i32_0 : i32, i32
  }
  func.func @transform_4(%arg0: i32) -> (i32, i32) {
    %c0_i32 = arith.constant 0 : i32
    %c0_i32_0 = arith.constant 0 : i32
    %c0_i32_1 = arith.constant 0 : i32
    return %c0_i32, %c0_i32_0 : i32, i32
  }
  func.func @transform_5(%arg0: i32) -> (i32, i32) {
    %c0_i32 = arith.constant 0 : i32
    %c0_i32_0 = arith.constant 0 : i32
    %c0_i32_1 = arith.constant 0 : i32
    return %c0_i32, %c0_i32_0 : i32, i32
  }
  func.func @transform_6(%arg0: i32) -> (i32, i32) {
    %c0_i32 = arith.constant 0 : i32
    %c0_i32_0 = arith.constant 0 : i32
    %c0_i32_1 = arith.constant 0 : i32
    return %c0_i32, %c0_i32_0 : i32, i32
  }
  func.func @transform_7(%arg0: i32) -> (i32, i32) {
    %c0_i32 = arith.constant 0 : i32
    %c0_i32_0 = arith.constant 0 : i32
    return %arg0, %c0_i32 : i32, i32
  }
}

</mosaic_0001>

<llo_original>
// kernel: tpu_custom_call.1
$region0: #{tpu_custom_call.1}
  #allocation0 [shape = 'u32[]', space=smem, size = 0x4, offset = 0x4, fixed_abs, tag = 'smem constant byte address 0x4 - core index']
  #allocation1 [shape = 'u32[144,128]{1,0:T(1,128)}', space=vmem, size = 0x12000, scoped, tag = 'internal scratch']
  %s0 = inlined_call_operand.hbm [shape: f32[8,16,32], index: 0, kind: input, shape index: {}]
  %s1 = inlined_call_operand.vmem [shape: bf16[32,128], index: 1, kind: input, shape index: {}]
  %s2 = inlined_call_operand.vmem [shape: bf16[128,32], index: 2, kind: input, shape index: {}]
  %s3 = inlined_call_operand.vmem [shape: bf16[32,32], index: 3, kind: input, shape index: {}]
  %s4 = inlined_call_operand.vmem [shape: f32[1,32], index: 4, kind: input, shape index: {}]
  %s5 = inlined_call_operand.vmem [shape: bf16[32,32], index: 5, kind: input, shape index: {}]
  %s6 = inlined_call_operand.vmem [shape: f32[1,32], index: 6, kind: input, shape index: {}]
  %s7 = inlined_call_operand.hbm [shape: f32[16,32], index: 7, kind: output, shape index: {}]
  %s8 = sld [smem:[#allocation0]]
  $region65: #{tpu_custom_call.1} parent=0
    _
  %s10 = ssub.s32 1, %s8
  %s11 = scalar_select 0, %s10, %s8
  $region1: #{tpu_custom_call.1} parent=0
    #allocation2 [shape = 'u8[65536]{0}', space=vmem, size = 0x10000, scoped, tag = 'input window, operand 0']
    #allocation3 [shape = 's32[2]{0}', space=sflag, size = 0x8, scoped, tag = 'scoped memory for tpu_custom_call.1']
    #allocation4 [shape = 's32[2]{0}', space=sflag, size = 0x8, scoped, tag = 'scoped memory for tpu_custom_call.1']
    #allocation5 [shape = 'u8[8192]{0}', space=vmem, size = 0x2000, scoped, tag = 'output window, operand 0']
    %12 = vsyncpa [#allocation3], 0
    %s13 = scalar_lea.sflag [#allocation3], 1
    %14 = vsyncpa %s13, 0
    %15 = vsyncpa [#allocation4], 0
    %s16 = scalar_lea.sflag [#allocation4], 1
    %17 = vsyncpa %s16, 0
    loop: start=0, step=1, limit=4
    $region2: #{tpu_custom_call.1} parent=1 // loop_pre_header
      _
    $region3: #{tpu_custom_call.1} parent=1 // loop_header
      %s19 = sphi 0, %s23
      %p20 = scmp.ge.s32.totalorder %s19, 4
      %s29 = sphi 0, %s31
      %s32 = sphi 0, %s29
      %s33 = sphi 0, %s32
      %s49 = sphi 0, %s33
      %s53 = sphi 0, %s53
      %s55 = sphi 0, %s53
      %s56 = sphi 0, %s55
      %s70 = sphi 0, %s56
      %s74 = sphi 0, %s74
      %s76 = sphi 0, %s74
      %s77 = sphi 0, %s76
      %s91 = sphi 0, %s77
      %s95 = sphi 0, %s95
      %s97 = sphi 0, %s95
      %s98 = sphi 0, %s97
      %s112 = sphi 0, %s98
      %s116 = sphi 0, %s116
      %s118 = sphi 0, %s116
      %s119 = sphi 0, %s118
      %s133 = sphi 0, %s119
      %s137 = sphi 0, %s137
      %s139 = sphi 0, %s137
      %s140 = sphi 0, %s139
      %s154 = sphi 0, %s140
      %s158 = sphi 0, %s158
      %s160 = sphi 0, %s158
      %s161 = sphi 0, %s160
      %s175 = sphi 0, %s161
      %s181 = sphi 0, %s183
      %s184 = sphi 0, %s181
      %s185 = sphi 0, %s184
      %s201 = sphi 0, %s185
    $region4: #{tpu_custom_call.1} parent=1 // loop_header_branch
      %22 = sbr.rel (%p20) target = $region8
    $region5: #{tpu_custom_call.1} parent=1 // loop_body
      %s24 = ssub.s32 %s19, 1
      %s25 = ssub.s32 %s19, 2
      %s26 = sadd.s32 %s19, 1
      %s27 = ssub.s32 %s19, %s26
      %p28 = scmp.eq.s32.totalorder %s27, 0
      %s30 = sadd.s32 %s29, 1
      %s31 = scalar_select %p28, %s29, %s30
      %p34 = pneg %p28
      %p35 = scmp.eq.s32.totalorder %s19, 1
      %p36 = por %p34, %p35
      %p37 = scmp.ne.s32.totalorder %s29, %s32
      %p38 = scmp.eq.s32.totalorder %s19, 0
      %p39 = por %p37, %p38
      %p40 = scmp.ne.s32.totalorder %s29, %s32
      %p41 = scmp.eq.s32.totalorder %s24, 1
      %p42 = por %p40, %p41
      %p43 = scmp.ne.s32.totalorder %s32, %s33
      %p44 = scmp.eq.s32.totalorder %s24, 0
      %p45 = por %p43, %p44
      %p46 = scmp.ne.s32.totalorder %s32, %s33
      %p47 = scmp.eq.s32.totalorder %s25, 1
      %p48 = por %p46, %p47
      %p50 = scmp.ne.s32.totalorder %s33, %s49
      %p51 = scmp.eq.s32.totalorder %s25, 0
      %p52 = por %p50, %p51
      %s54 = sadd.s32 %s53, 1
      %p57 = scmp.eq.s32.totalorder %s19, 1
      %p58 = scmp.ne.s32.totalorder %s53, %s55
      %p59 = scmp.eq.s32.totalorder %s19, 0
      %p60 = por %p58, %p59
      %p61 = scmp.ne.s32.totalorder %s53, %s55
      %p62 = scmp.eq.s32.totalorder %s24, 1
      %p63 = por %p61, %p62
      %p64 = scmp.ne.s32.totalorder %s55, %s56
      %p65 = scmp.eq.s32.totalorder %s24, 0
      %p66 = por %p64, %p65
      %p67 = scmp.ne.s32.totalorder %s55, %s56
      %p68 = scmp.eq.s32.totalorder %s25, 1
      %p69 = por %p67, %p68
      %p71 = scmp.ne.s32.totalorder %s56, %s70
      %p72 = scmp.eq.s32.totalorder %s25, 0
      %p73 = por %p71, %p72
      %s75 = sadd.s32 %s74, 1
      %p78 = scmp.eq.s32.totalorder %s19, 1
      %p79 = scmp.ne.s32.totalorder %s74, %s76
      %p80 = scmp.eq.s32.totalorder %s19, 0
      %p81 = por %p79, %p80
      %p82 = scmp.ne.s32.totalorder %s74, %s76
      %p83 = scmp.eq.s32.totalorder %s24, 1
      %p84 = por %p82, %p83
      %p85 = scmp.ne.s32.totalorder %s76, %s77
      %p86 = scmp.eq.s32.totalorder %s24, 0
      %p87 = por %p85, %p86
      %p88 = scmp.ne.s32.totalorder %s76, %s77
      %p89 = scmp.eq.s32.totalorder %s25, 1
      %p90 = por %p88, %p89
      %p92 = scmp.ne.s32.totalorder %s77, %s91
      %p93 = scmp.eq.s32.totalorder %s25, 0
      %p94 = por %p92, %p93
      %s96 = sadd.s32 %s95, 1
      %p99 = scmp.eq.s32.totalorder %s19, 1
      %p100 = scmp.ne.s32.totalorder %s95, %s97
      %p101 = scmp.eq.s32.totalorder %s19, 0
      %p102 = por %p100, %p101
      %p103 = scmp.ne.s32.totalorder %s95, %s97
      %p104 = scmp.eq.s32.totalorder %s24, 1
      %p105 = por %p103, %p104
      %p106 = scmp.ne.s32.totalorder %s97, %s98
      %p107 = scmp.eq.s32.totalorder %s24, 0
      %p108 = por %p106, %p107
      %p109 = scmp.ne.s32.totalorder %s97, %s98
      %p110 = scmp.eq.s32.totalorder %s25, 1
      %p111 = por %p109, %p110
      %p113 = scmp.ne.s32.totalorder %s98, %s112
      %p114 = scmp.eq.s32.totalorder %s25, 0
      %p115 = por %p113, %p114
      %s117 = sadd.s32 %s116, 1
      %p120 = scmp.eq.s32.totalorder %s19, 1
      %p121 = scmp.ne.s32.totalorder %s116, %s118
      %p122 = scmp.eq.s32.totalorder %s19, 0
      %p123 = por %p121, %p122
      %p124 = scmp.ne.s32.totalorder %s116, %s118
      %p125 = scmp.eq.s32.totalorder %s24, 1
      %p126 = por %p124, %p125
      %p127 = scmp.ne.s32.totalorder %s118, %s119
      %p128 = scmp.eq.s32.totalorder %s24, 0
      %p129 = por %p127, %p128
      %p130 = scmp.ne.s32.totalorder %s118, %s119
      %p131 = scmp.eq.s32.totalorder %s25, 1
      %p132 = por %p130, %p131
      %p134 = scmp.ne.s32.totalorder %s119, %s133
      %p135 = scmp.eq.s32.totalorder %s25, 0
      %p136 = por %p134, %p135
      %s138 = sadd.s32 %s137, 1
      %p141 = scmp.eq.s32.totalorder %s19, 1
      %p142 = scmp.ne.s32.totalorder %s137, %s139
      %p143 = scmp.eq.s32.totalorder %s19, 0
      %p144 = por %p142, %p143
      %p145 = scmp.ne.s32.totalorder %s137, %s139
      %p146 = scmp.eq.s32.totalorder %s24, 1
      %p147 = por %p145, %p146
      %p148 = scmp.ne.s32.totalorder %s139, %s140
      %p149 = scmp.eq.s32.totalorder %s24, 0
      %p150 = por %p148, %p149
      %p151 = scmp.ne.s32.totalorder %s139, %s140
      %p152 = scmp.eq.s32.totalorder %s25, 1
      %p153 = por %p151, %p152
      %p155 = scmp.ne.s32.totalorder %s140, %s154
      %p156 = scmp.eq.s32.totalorder %s25, 0
      %p157 = por %p155, %p156
      %s159 = sadd.s32 %s158, 1
      %p162 = scmp.eq.s32.totalorder %s19, 1
      %p163 = scmp.ne.s32.totalorder %s158, %s160
      %p164 = scmp.eq.s32.totalorder %s19, 0
      %p165 = por %p163, %p164
      %p166 = scmp.ne.s32.totalorder %s158, %s160
      %p167 = scmp.eq.s32.totalorder %s24, 1
      %p168 = por %p166, %p167
      %p169 = scmp.ne.s32.totalorder %s160, %s161
      %p170 = scmp.eq.s32.totalorder %s24, 0
      %p171 = por %p169, %p170
      %p172 = scmp.ne.s32.totalorder %s160, %s161
      %p173 = scmp.eq.s32.totalorder %s25, 1
      %p174 = por %p172, %p173
      %p176 = scmp.ne.s32.totalorder %s161, %s175
      %p177 = scmp.eq.s32.totalorder %s25, 0
      %p178 = por %p176, %p177
      %s179 = ssub.s32 %s19, %s26
      %p180 = scmp.eq.s32.totalorder %s179, 0
      %s182 = sadd.s32 %s181, 1
      %s183 = scalar_select %p180, %s181, %s182
      %p186 = pneg %p180
      %p187 = scmp.eq.s32.totalorder %s19, 1
      %p188 = por %p186, %p187
      %p189 = scmp.ne.s32.totalorder %s181, %s184
      %p190 = scmp.eq.s32.totalorder %s19, 0
      %p191 = por %p189, %p190
      %p192 = scmp.ne.s32.totalorder %s181, %s184
      %p193 = scmp.eq.s32.totalorder %s24, 1
      %p194 = por %p192, %p193
      %p195 = scmp.ne.s32.totalorder %s184, %s185
      %p196 = scmp.eq.s32.totalorder %s24, 0
      %p197 = por %p195, %p196
      %p198 = scmp.ne.s32.totalorder %s184, %s185
      %p199 = scmp.eq.s32.totalorder %s25, 1
      %p200 = por %p198, %p199
      %p202 = scmp.ne.s32.totalorder %s185, %s201
      %p203 = scmp.eq.s32.totalorder %s25, 0
      %p204 = por %p202, %p203
      %p205 = scmp.le.s32.totalorder 1, %s19
      %p206 = scmp.lt.s32.totalorder %s19, 3
      %p207 = pnand %p205, %p206
      %p208 = pneg %p207
      // Predicated region
      $region9: #{tpu_custom_call.1} parent=5 // pred_check
        _
      $region10: #{tpu_custom_call.1} parent=5 // pred_check_branch
        %210 = sbr.rel (%p207) target = $region12
      $region11: #{tpu_custom_call.1} parent=5 // pred_region
        %s211 = ssub.s32 %s19, 1
        // Predicated region
        $region13: #{tpu_custom_call.1} parent=11 // pred_check
          %p212 = pneg %p66
        $region14: #{tpu_custom_call.1} parent=11 // pred_check_branch
          %214 = sbr.rel (%p212) target = $region16
        $region15: #{tpu_custom_call.1} parent=11 // pred_region
          _
        $region16: #{tpu_custom_call.1} parent=11 // pred_fallthru
          _
        // Predicated region
        $region17: #{tpu_custom_call.1} parent=11 // pred_check
          %p215 = pneg %p87
        $region18: #{tpu_custom_call.1} parent=11 // pred_check_branch
          %217 = sbr.rel (%p215) target = $region20
        $region19: #{tpu_custom_call.1} parent=11 // pred_region
          _
        $region20: #{tpu_custom_call.1} parent=11 // pred_fallthru
          _
        // Predicated region
        $region21: #{tpu_custom_call.1} parent=11 // pred_check
          %p218 = pneg %p108
        $region22: #{tpu_custom_call.1} parent=11 // pred_check_branch
          %220 = sbr.rel (%p218) target = $region24
        $region23: #{tpu_custom_call.1} parent=11 // pred_region
          _
        $region24: #{tpu_custom_call.1} parent=11 // pred_fallthru
          _
        // Predicated region
        $region25: #{tpu_custom_call.1} parent=11 // pred_check
          %p221 = pneg %p129
        $region26: #{tpu_custom_call.1} parent=11 // pred_check_branch
          %223 = sbr.rel (%p221) target = $region28
        $region27: #{tpu_custom_call.1} parent=11 // pred_region
          _
        $region28: #{tpu_custom_call.1} parent=11 // pred_fallthru
          _
        // Predicated region
        $region29: #{tpu_custom_call.1} parent=11 // pred_check
          %p224 = pneg %p150
        $region30: #{tpu_custom_call.1} parent=11 // pred_check_branch
          %226 = sbr.rel (%p224) target = $region32
        $region31: #{tpu_custom_call.1} parent=11 // pred_region
          _
        $region32: #{tpu_custom_call.1} parent=11 // pred_fallthru
          _
        // Predicated region
        $region33: #{tpu_custom_call.1} parent=11 // pred_check
          %p227 = pneg %p171
        $region34: #{tpu_custom_call.1} parent=11 // pred_check_branch
          %229 = sbr.rel (%p227) target = $region36
        $region35: #{tpu_custom_call.1} parent=11 // pred_region
          _
        $region36: #{tpu_custom_call.1} parent=11 // pred_fallthru
          _
      $region12: #{tpu_custom_call.1} parent=5 // pred_fallthru
        _
      %p230 = scmp.lt.s32.totalorder %s19, 2
      // Predicated region
      $region37: #{tpu_custom_call.1} parent=5 // pred_check
        %p231 = pneg %p230
      $region38: #{tpu_custom_call.1} parent=5 // pred_check_branch
        %233 = sbr.rel (%p231) target = $region40
      $region39: #{tpu_custom_call.1} parent=5 // pred_region
        // Predicated region
        $region41: #{tpu_custom_call.1} parent=39 // pred_check
          %p234 = pneg %p39
        $region42: #{tpu_custom_call.1} parent=39 // pred_check_branch
          %236 = sbr.rel (%p234) target = $region44
        $region43: #{tpu_custom_call.1} parent=39 // pred_region
          %s237 = sand.u32 %s29, 1
          %s238 = scalar_lea.sflag [#allocation3], %s237
          %s239 = sand.u32 %s29, 1
          %s240 = smul.addr %s239, 64
          %s241 = scalar_lea.vmem [#allocation2], %s240
          %s243 = ssub.s32 1024, 1024
          %244 = vsyncadd %s238, %s243
          %s245 = smul.addr %s19, 128
          %s246 = scalar_lea.hbm %s0, %s245
          %s247 = sshll.u32 %s241, 4
          %s248 = int_to_ptr.vmem [resolvable:$true] %s247
          %253 = dma.hbm_to_vmem [thread:$0]  %s246, 1024, %s248, %s238, 256, 128, 8
        $region44: #{tpu_custom_call.1} parent=39 // pred_fallthru
          _
      $region40: #{tpu_custom_call.1} parent=5 // pred_fallthru
        _
      %p254 = scmp.le.s32.totalorder 1, %s19
      %p255 = scmp.lt.s32.totalorder %s19, 3
      %p256 = pnand %p254, %p255
      %p257 = pneg %p256
      // Predicated region
      $region45: #{tpu_custom_call.1} parent=5 // pred_check
        _
      $region46: #{tpu_custom_call.1} parent=5 // pred_check_branch
        %259 = sbr.rel (%p256) target = $region48
      $region47: #{tpu_custom_call.1} parent=5 // pred_region
        %s260 = ssub.s32 %s19, 1
        %s261 = sand.u32 %s32, 1
        %s262 = scalar_lea.sflag [#allocation3], %s261
        %s263 = sand.u32 %s32, 1
        %s264 = smul.addr %s263, 64
        %s265 = scalar_lea.vmem [#allocation2], %s264
        // Predicated region
        $region49: #{tpu_custom_call.1} parent=47 // pred_check
          %p266 = pneg %p45
        $region50: #{tpu_custom_call.1} parent=47 // pred_check_branch
          %268 = sbr.rel (%p266) target = $region52
        $region51: #{tpu_custom_call.1} parent=47 // pred_region
          %269 = dma.done %s262, 1024
        $region52: #{tpu_custom_call.1} parent=47 // pred_fallthru
          _
        %s270 = sand.u32 %s32, 1
        %s271 = scalar_lea.sflag [#allocation3], %s270
        %s272 = sand.u32 %s32, 1
        %s273 = smul.addr %s272, 64
        %s274 = scalar_lea.vmem [#allocation2], %s273
        %p275 = pneg %p45
        %p276 = pneg %p42
        %p277 = pneg %p66
        %p278 = pneg %p63
        %p279 = pneg %p87
        %p280 = pneg %p84
        %p281 = pneg %p108
        %p282 = pneg %p105
        %p283 = pneg %p129
        %p284 = pneg %p126
        %p285 = pneg %p150
        %p286 = pneg %p147
        %p287 = pneg %p171
        %p288 = pneg %p168
        %p289 = pneg %p197
        %p290 = pneg %p194
        %s291 = sand.u32 %s184, 1
        %s292 = scalar_lea.sflag [#allocation4], %s291
        %s293 = sand.u32 %s184, 1
        %s294 = smul.addr %s293, 8
        %s295 = scalar_lea.vmem [#allocation5], %s294
        %v297 = vld [vmem:[%s265] sm:$0xff]
        %v298 = vld [vmem:[%s265 + $0x8] sm:$0xff]
        %v299 = vld [vmem:[%s265 + $0x10] sm:$0xff]
        %v300 = vld [vmem:[%s265 + $0x18] sm:$0xff]
        %v301 = vld [vmem:[%s265 + $0x20] sm:$0xff]
        %v302 = vld [vmem:[%s265 + $0x28] sm:$0xff]
        %v303 = vld [vmem:[%s265 + $0x30] sm:$0xff]
        %v304 = vld [vmem:[%s265 + $0x38] sm:$0xff]
        %v305 = vpack.c.bf16 %v298, %v297
        %v306 = vpack.c.bf16 %v300, %v299
        %v307 = vpack.c.bf16 %v302, %v301
        %v308 = vpack.c.bf16 %v304, %v303
        %v309 = vld [vmem:[%s3] sm:$0xf]
        %v310 = vld [vmem:[%s3 + $0x4] sm:$0xf]
        %v311 = vld [vmem:[%s3 + $0x8] sm:$0xf]
        %v312 = vld [vmem:[%s3 + $0xc] sm:$0xf]
        %v313 = vld [vmem:[%s4] sm:$0x1]
        %v315 = vlaneseq
        %v316 = vshrl.u32 %v315, 7
        %v317 = vsub.s32 0, %v316
        %v318 = vrot.slane %v313, %v317
        %v324 = vunpack.c.l.b16 %v309
        %v325 = vunpack.c.l.b16 %v310
        %v326 = vunpack.c.l.b16 %v311
        %v327 = vunpack.c.l.b16 %v312
        %v328 = vpack.c.b16 %v325, %v324
        %v329 = vpack.c.b16 %v327, %v326
        %vm332 = vcmask 261120
        %v334 = vsel %vm332, %v305, 0
        %v337 = vsel %vm332, %v306, 0
        %v340 = vsel %vm332, %v307, 0
        %v343 = vsel %vm332, %v308, 0
        %345 = vmatprep.subr.bf16.mxu0 0
        %346 = vmatpush1.bf16.msra.mxu0 0
        %347 = vmatprep.subr.bf16.mxu0 0
        %348 = vmatpush1.bf16.msra.mxu0 0
        %349 = vmatprep.subr.bf16.mxu0 0
        %350 = vmatpush1.bf16.msra.mxu0 0
        %351 = vmatprep.subr.bf16.mxu0 0
        %352 = vmatpush1.bf16.msra.mxu0 0
        %353 = vmatprep.subr.bf16.mxu0 0
        %354 = vmatpush1.bf16.msra.mxu0 0
        %355 = vmatprep.subr.bf16.mxu0 0
        %356 = vmatpush1.bf16.msra.mxu0 0
        %357 = vmatprep.subr.bf16.mxu0 0
        %358 = vmatpush1.bf16.msra.mxu0 %v329
        %359 = vmatprep.subr.bf16.mxu0 0
        %360 = vmatpush1.bf16.msra.mxu0 %v328
        %361 = vmatprep.subr.bf16.mxu0 0
        %362 = vmatpush2.bf16.msra.mxu0 0
        %363 = vmatprep.subr.bf16.mxu0 0
        %364 = vmatpush2.bf16.msra.mxu0 0
        %365 = vmatprep.subr.bf16.mxu0 0
        %366 = vmatpush2.bf16.msra.mxu0 0
        %367 = vmatprep.subr.bf16.mxu0 0
        %368 = vmatpush2.bf16.msra.mxu0 0
        %369 = vmatprep.subr.bf16.mxu0 0
        %370 = vmatpush2.bf16.msra.mxu0 0
        %371 = vmatprep.subr.bf16.mxu0 0
        %372 = vmatpush2.bf16.msra.mxu0 0
        %373 = vmatprep.subr.bf16.mxu0 0
        %374 = vmatpush2.bf16.msra.mxu0 0
        %375 = vmatprep.subr.bf16.mxu0 0
        %376 = vmatpush2.bf16.msra.mxu0 0
        %377 = vmatprep.mubr.bf16.mxu0 0
        %378 = vmatmul.mubr.bf16.gmra.mxu0 %v334
        %v379 = vpop.f32.mrf.mxu0
        %v380 = vadd.f32 %v318, %v379
        %v381 = vpop.f32.mrf.mxu0
        %v382 = vpop.f32.mrf.mxu0
        %v383 = vadd.f32 %v318, %v382
        %v384 = vpop.f32.mrf.mxu0
        %385 = vmatprep.mubr.bf16.mxu0 0
        %386 = vmatmul.mubr.bf16.gmra.mxu0 %v337
        %v387 = vpop.f32.mrf.mxu0
        %v388 = vadd.f32 %v318, %v387
        %v389 = vpop.f32.mrf.mxu0
        %v390 = vpop.f32.mrf.mxu0
        %v391 = vadd.f32 %v318, %v390
        %v392 = vpop.f32.mrf.mxu0
        %393 = vmatprep.mubr.bf16.mxu0 0
        %394 = vmatmul.mubr.bf16.gmra.mxu0 %v340
        %v395 = vpop.f32.mrf.mxu0
        %v396 = vadd.f32 %v318, %v395
        %v397 = vpop.f32.mrf.mxu0
        %v398 = vpop.f32.mrf.mxu0
        %v399 = vadd.f32 %v318, %v398
        %v400 = vpop.f32.mrf.mxu0
        %401 = vmatprep.mubr.bf16.mxu0 0
        %402 = vmatmul.mubr.bf16.gmra.mxu0 %v343
        %v403 = vpop.f32.mrf.mxu0
        %v404 = vadd.f32 %v318, %v403
        %v405 = vpop.f32.mrf.mxu0
        %v406 = vpop.f32.mrf.mxu0
        %v407 = vadd.f32 %v318, %v406
        %v408 = vpop.f32.mrf.mxu0
        %409 = vdwg.mxu0
        %v410 = vld [vmem:[%s1] sm:$0xf]
        %v411 = vld [vmem:[%s1 + $0x4] sm:$0xf]
        %v412 = vld [vmem:[%s1 + $0x8] sm:$0xf]
        %v413 = vld [vmem:[%s1 + $0xc] sm:$0xf]
        %v418 = vunpack.c.l.b16 %v410
        %v419 = vunpack.c.l.b16 %v411
        %v420 = vunpack.c.l.b16 %v412
        %v421 = vunpack.c.l.b16 %v413
        %v422 = vpack.c.b16 %v419, %v418
        %v423 = vpack.c.b16 %v421, %v420
        %426 = vmatprep.subr.bf16.mxu0 0
        %427 = vmatpush1.bf16.msra.mxu0 0
        %428 = vmatprep.subr.bf16.mxu0 0
        %429 = vmatpush1.bf16.msra.mxu0 0
        %430 = vmatprep.subr.bf16.mxu0 0
        %431 = vmatpush1.bf16.msra.mxu0 0
        %432 = vmatprep.subr.bf16.mxu0 0
        %433 = vmatpush1.bf16.msra.mxu0 0
        %434 = vmatprep.subr.bf16.mxu0 0
        %435 = vmatpush1.bf16.msra.mxu0 0
        %436 = vmatprep.subr.bf16.mxu0 0
        %437 = vmatpush1.bf16.msra.mxu0 0
        %438 = vmatprep.subr.bf16.mxu0 0
        %439 = vmatpush1.bf16.msra.mxu0 %v423
        %440 = vmatprep.subr.bf16.mxu0 0
        %441 = vmatpush1.bf16.msra.mxu0 %v422
        %442 = vmatprep.subr.bf16.mxu0 0
        %443 = vmatpush2.bf16.msra.mxu0 0
        %444 = vmatprep.subr.bf16.mxu0 0
        %445 = vmatpush2.bf16.msra.mxu0 0
        %446 = vmatprep.subr.bf16.mxu0 0
        %447 = vmatpush2.bf16.msra.mxu0 0
        %448 = vmatprep.subr.bf16.mxu0 0
        %449 = vmatpush2.bf16.msra.mxu0 0
        %450 = vmatprep.subr.bf16.mxu0 0
        %451 = vmatpush2.bf16.msra.mxu0 0
        %452 = vmatprep.subr.bf16.mxu0 0
        %453 = vmatpush2.bf16.msra.mxu0 0
        %454 = vmatprep.subr.bf16.mxu0 0
        %455 = vmatpush2.bf16.msra.mxu0 0
        %456 = vmatprep.subr.bf16.mxu0 0
        %457 = vmatpush2.bf16.msra.mxu0 0
        %458 = vmatprep.mubr.bf16.mxu0 0
        %459 = vmatmul.mubr.bf16.gmra.mxu0 %v334
        %v460 = vpop.f32.mrf.mxu0
        %v461 = vadd.f32 0.0, %v460
        %v462 = vpop.f32.mrf.mxu0
        %v463 = vpop.f32.mrf.mxu0
        %v464 = vadd.f32 0.0, %v463
        %v465 = vpop.f32.mrf.mxu0
        %466 = vmatprep.mubr.bf16.mxu0 0
        %467 = vmatmul.mubr.bf16.gmra.mxu0 %v337
        %v468 = vpop.f32.mrf.mxu0
        %v469 = vadd.f32 0.0, %v468
        %v470 = vpop.f32.mrf.mxu0
        %v471 = vpop.f32.mrf.mxu0
        %v472 = vadd.f32 0.0, %v471
        %v473 = vpop.f32.mrf.mxu0
        %474 = vmatprep.mubr.bf16.mxu0 0
        %475 = vmatmul.mubr.bf16.gmra.mxu0 %v340
        %v476 = vpop.f32.mrf.mxu0
        %v477 = vadd.f32 0.0, %v476
        %v478 = vpop.f32.mrf.mxu0
        %v479 = vpop.f32.mrf.mxu0
        %v480 = vadd.f32 0.0, %v479
        %v481 = vpop.f32.mrf.mxu0
        %482 = vmatprep.mubr.bf16.mxu0 0
        %483 = vmatmul.mubr.bf16.gmra.mxu0 %v343
        %v484 = vpop.f32.mrf.mxu0
        %v485 = vadd.f32 0.0, %v484
        %v486 = vpop.f32.mrf.mxu0
        %v487 = vpop.f32.mrf.mxu0
        %v488 = vadd.f32 0.0, %v487
        %v489 = vpop.f32.mrf.mxu0
        %490 = vdwg.mxu0
        %v491 = vmax.f32 %v461, %v477
        %v492 = vmax.f32 %v464, %v480
        %v493 = vmax.f32 %v469, %v485
        %v494 = vmax.f32 %v472, %v488
        %v495 = vmax.f32 %v491, %v492
        %v496 = vmax.f32 %v493, %v494
        %v497 = vmax.f32 %v495, %v496
        %v498 = vsub.f32 %v461, %v497
        %v499 = vsub.f32 %v464, %v497
        %v500 = vsub.f32 %v469, %v497
        %v501 = vsub.f32 %v472, %v497
        %v502 = vsub.f32 %v477, %v497
        %v503 = vsub.f32 %v480, %v497
        %v504 = vsub.f32 %v485, %v497
        %v505 = vsub.f32 %v488, %v497
        %v506 = vmul.f32 %v498, 1.442695
        %v507 = vpow.pop %v506
        %v508 = vmul.f32 %v499, 1.442695
        %v509 = vpow.pop %v508
        %v510 = vmul.f32 %v500, 1.442695
        %v511 = vpow.pop %v510
        %v512 = vmul.f32 %v501, 1.442695
        %v513 = vpow.pop %v512
        %v514 = vmul.f32 %v502, 1.442695
        %v515 = vpow.pop %v514
        %v516 = vmul.f32 %v503, 1.442695
        %v517 = vpow.pop %v516
        %v518 = vmul.f32 %v504, 1.442695
        %v519 = vpow.pop %v518
        %v520 = vmul.f32 %v505, 1.442695
        %v521 = vpow.pop %v520
        %v522 = vadd.f32 %v507, %v509
        %v523 = vadd.f32 %v522, %v511
        %v524 = vadd.f32 %v523, %v513
        %v525 = vadd.f32 %v524, %v515
        %v526 = vadd.f32 %v525, %v517
        %v527 = vadd.f32 %v526, %v519
        %v528 = vadd.f32 %v527, %v521
        %v529 = vrcp.pop %v528
        %v530 = vmul.f32 %v507, %v529
        %v531 = vmul.f32 %v509, %v529
        %v532 = vmul.f32 %v511, %v529
        %v533 = vmul.f32 %v513, %v529
        %v534 = vmul.f32 %v515, %v529
        %v535 = vmul.f32 %v517, %v529
        %v536 = vmul.f32 %v519, %v529
        %v537 = vmul.f32 %v521, %v529
        %v538 = vpack.c.bf16 %v531, %v530
        %v539 = vpack.c.bf16 %v533, %v532
        %v540 = vpack.c.bf16 %v535, %v534
        %v541 = vpack.c.bf16 %v537, %v536
        %v542 = vld [vmem:[%s2] sm:$0xf]
        %v543 = vld [vmem:[%s2 + $0x4] sm:$0xf]
        %v544 = vld [vmem:[%s2 + $0x8] sm:$0xf]
        %v545 = vld [vmem:[%s2 + $0xc] sm:$0xf]
        %v546 = vld [vmem:[%s2 + $0x10] sm:$0xf]
        %v547 = vld [vmem:[%s2 + $0x14] sm:$0xf]
        %v548 = vld [vmem:[%s2 + $0x18] sm:$0xf]
        %v549 = vld [vmem:[%s2 + $0x1c] sm:$0xf]
        %v550 = vld [vmem:[%s2 + $0x20] sm:$0xf]
        %v551 = vld [vmem:[%s2 + $0x24] sm:$0xf]
        %v552 = vld [vmem:[%s2 + $0x28] sm:$0xf]
        %v553 = vld [vmem:[%s2 + $0x2c] sm:$0xf]
        %v554 = vld [vmem:[%s2 + $0x30] sm:$0xf]
        %v555 = vld [vmem:[%s2 + $0x34] sm:$0xf]
        %v556 = vld [vmem:[%s2 + $0x38] sm:$0xf]
        %v557 = vld [vmem:[%s2 + $0x3c] sm:$0xf]
        %v574 = vunpack.c.l.b16 %v542
        %v575 = vunpack.c.l.b16 %v543
        %v576 = vunpack.c.l.b16 %v544
        %v577 = vunpack.c.l.b16 %v545
        %v578 = vunpack.c.l.b16 %v546
        %v579 = vunpack.c.l.b16 %v547
        %v580 = vunpack.c.l.b16 %v548
        %v581 = vunpack.c.l.b16 %v549
        %v582 = vunpack.c.l.b16 %v550
        %v583 = vunpack.c.l.b16 %v551
        %v584 = vunpack.c.l.b16 %v552
        %v585 = vunpack.c.l.b16 %v553
        %v586 = vunpack.c.l.b16 %v554
        %v587 = vunpack.c.l.b16 %v555
        %v588 = vunpack.c.l.b16 %v556
        %v589 = vunpack.c.l.b16 %v557
        %v590 = vpack.c.b16 %v575, %v574
        %v591 = vpack.c.b16 %v577, %v576
        %v592 = vpack.c.b16 %v579, %v578
        %v593 = vpack.c.b16 %v581, %v580
        %v594 = vpack.c.b16 %v583, %v582
        %v595 = vpack.c.b16 %v585, %v584
        %v596 = vpack.c.b16 %v587, %v586
        %v597 = vpack.c.b16 %v589, %v588
        %606 = vmatprep.subr.bf16.mxu0 0
        %607 = vmatpush1.bf16.msra.mxu0 %v597
        %608 = vmatprep.subr.bf16.mxu0 0
        %609 = vmatpush1.bf16.msra.mxu0 %v596
        %610 = vmatprep.subr.bf16.mxu0 0
        %611 = vmatpush1.bf16.msra.mxu0 %v595
        %612 = vmatprep.subr.bf16.mxu0 0
        %613 = vmatpush1.bf16.msra.mxu0 %v594
        %614 = vmatprep.subr.bf16.mxu0 0
        %615 = vmatpush1.bf16.msra.mxu0 %v593
        %616 = vmatprep.subr.bf16.mxu0 0
        %617 = vmatpush1.bf16.msra.mxu0 %v592
        %618 = vmatprep.subr.bf16.mxu0 0
        %619 = vmatpush1.bf16.msra.mxu0 %v591
        %620 = vmatprep.subr.bf16.mxu0 0
        %621 = vmatpush1.bf16.msra.mxu0 %v590
        %622 = vmatprep.subr.bf16.mxu0 0
        %623 = vmatpush2.bf16.msra.mxu0 0
        %624 = vmatprep.subr.bf16.mxu0 0
        %625 = vmatpush2.bf16.msra.mxu0 0
        %626 = vmatprep.subr.bf16.mxu0 0
        %627 = vmatpush2.bf16.msra.mxu0 0
        %628 = vmatprep.subr.bf16.mxu0 0
        %629 = vmatpush2.bf16.msra.mxu0 0
        %630 = vmatprep.subr.bf16.mxu0 0
        %631 = vmatpush2.bf16.msra.mxu0 0
        %632 = vmatprep.subr.bf16.mxu0 0
        %633 = vmatpush2.bf16.msra.mxu0 0
        %634 = vmatprep.subr.bf16.mxu0 0
        %635 = vmatpush2.bf16.msra.mxu0 0
        %636 = vmatprep.subr.bf16.mxu0 0
        %637 = vmatpush2.bf16.msra.mxu0 0
        %638 = vmatprep.mubr.bf16.mxu0 0
        %639 = vmatmul.mubr.bf16.gmra.mxu0 %v538
        %v640 = vpop.f32.mrf.mxu0
        %v641 = vadd.f32 0.0, %v640
        %v642 = vpop.f32.mrf.mxu0
        %v643 = vpop.f32.mrf.mxu0
        %v644 = vadd.f32 0.0, %v643
        %v645 = vpop.f32.mrf.mxu0
        %646 = vmatprep.mubr.bf16.mxu0 0
        %647 = vmatmul.mubr.bf16.gmra.mxu0 %v539
        %v648 = vpop.f32.mrf.mxu0
        %v649 = vadd.f32 0.0, %v648
        %v650 = vpop.f32.mrf.mxu0
        %v651 = vpop.f32.mrf.mxu0
        %v652 = vadd.f32 0.0, %v651
        %v653 = vpop.f32.mrf.mxu0
        %654 = vmatprep.mubr.bf16.mxu0 0
        %655 = vmatmul.mubr.bf16.gmra.mxu0 %v540
        %v656 = vpop.f32.mrf.mxu0
        %v657 = vadd.f32 0.0, %v656
        %v658 = vpop.f32.mrf.mxu0
        %v659 = vpop.f32.mrf.mxu0
        %v660 = vadd.f32 0.0, %v659
        %v661 = vpop.f32.mrf.mxu0
        %662 = vmatprep.mubr.bf16.mxu0 0
        %663 = vmatmul.mubr.bf16.gmra.mxu0 %v541
        %v664 = vpop.f32.mrf.mxu0
        %v665 = vadd.f32 0.0, %v664
        %v666 = vpop.f32.mrf.mxu0
        %v667 = vpop.f32.mrf.mxu0
        %v668 = vadd.f32 0.0, %v667
        %v669 = vpop.f32.mrf.mxu0
        %670 = vdwg.mxu0
        %v671 = vmul.f32 %v641, %v380
        %v672 = vmul.f32 %v644, %v383
        %v673 = vmul.f32 %v649, %v388
        %v674 = vmul.f32 %v652, %v391
        %v675 = vmul.f32 %v657, %v396
        %v676 = vmul.f32 %v660, %v399
        %v677 = vmul.f32 %v665, %v404
        %v678 = vmul.f32 %v668, %v407
        %v679 = vsel %vm332, %v671, 0.0
        %v680 = vsel %vm332, %v672, 0.0
        %v681 = vadd.f32 %v679, %v680
        %v682 = vsel %vm332, %v673, 0.0
        %v683 = vadd.f32 %v681, %v682
        %v684 = vsel %vm332, %v674, 0.0
        %v685 = vadd.f32 %v683, %v684
        %v686 = vsel %vm332, %v675, 0.0
        %v687 = vadd.f32 %v685, %v686
        %v688 = vsel %vm332, %v676, 0.0
        %v689 = vadd.f32 %v687, %v688
        %v690 = vsel %vm332, %v677, 0.0
        %v691 = vadd.f32 %v689, %v690
        %v692 = vsel %vm332, %v678, 0.0
        %v693 = vadd.f32 %v691, %v692
        %v694 = vpack.c.bf16 %v693, %v693
        %v695 = vld [vmem:[%s5] sm:$0xf]
        %v696 = vld [vmem:[%s5 + $0x4] sm:$0xf]
        %v697 = vld [vmem:[%s5 + $0x8] sm:$0xf]
        %v698 = vld [vmem:[%s5 + $0xc] sm:$0xf]
        %v699 = vld [vmem:[%s6] sm:$0x1]
        %v701 = vlaneseq
        %v702 = vshrl.u32 %v701, 7
        %v703 = vsub.s32 0, %v702
        %v704 = vrot.slane %v699, %v703
        %v710 = vunpack.c.l.b16 %v695
        %v711 = vunpack.c.l.b16 %v696
        %v712 = vunpack.c.l.b16 %v697
        %v713 = vunpack.c.l.b16 %v698
        %v714 = vpack.c.b16 %v711, %v710
        %v715 = vpack.c.b16 %v713, %v712
        %v719 = vsel %vm332, %v694, 0
        %721 = vmatprep.subr.bf16.mxu0 0
        %722 = vmatpush1.bf16.msra.mxu0 0
        %723 = vmatprep.subr.bf16.mxu0 0
        %724 = vmatpush1.bf16.msra.mxu0 0
        %725 = vmatprep.subr.bf16.mxu0 0
        %726 = vmatpush1.bf16.msra.mxu0 0
        %727 = vmatprep.subr.bf16.mxu0 0
        %728 = vmatpush1.bf16.msra.mxu0 0
        %729 = vmatprep.subr.bf16.mxu0 0
        %730 = vmatpush1.bf16.msra.mxu0 0
        %731 = vmatprep.subr.bf16.mxu0 0
        %732 = vmatpush1.bf16.msra.mxu0 0
        %733 = vmatprep.subr.bf16.mxu0 0
        %734 = vmatpush1.bf16.msra.mxu0 %v715
        %735 = vmatprep.subr.bf16.mxu0 0
        %736 = vmatpush1.bf16.msra.mxu0 %v714
        %737 = vmatprep.subr.bf16.mxu0 0
        %738 = vmatpush2.bf16.msra.mxu0 0
        %739 = vmatprep.subr.bf16.mxu0 0
        %740 = vmatpush2.bf16.msra.mxu0 0
        %741 = vmatprep.subr.bf16.mxu0 0
        %742 = vmatpush2.bf16.msra.mxu0 0
        %743 = vmatprep.subr.bf16.mxu0 0
        %744 = vmatpush2.bf16.msra.mxu0 0
        %745 = vmatprep.subr.bf16.mxu0 0
        %746 = vmatpush2.bf16.msra.mxu0 0
        %747 = vmatprep.subr.bf16.mxu0 0
        %748 = vmatpush2.bf16.msra.mxu0 0
        %749 = vmatprep.subr.bf16.mxu0 0
        %750 = vmatpush2.bf16.msra.mxu0 0
        %751 = vmatprep.subr.bf16.mxu0 0
        %752 = vmatpush2.bf16.msra.mxu0 0
        %753 = vmatprep.mubr.bf16.mxu0 0
        %754 = vmatmul.mubr.bf16.gmra.mxu0 %v719
        %v755 = vpop.f32.mrf.mxu0
        %v756 = vadd.f32 %v704, %v755
        %v757 = vpop.f32.mrf.mxu0
        %v758 = vpop.f32.mrf.mxu0
        %v759 = vpop.f32.mrf.mxu0
        %760 = vdwg.mxu0
        %761 = vst.msk [vmem:[%s295] sm:$0xff] %vm332, %v756
        %s762 = sand.u32 %s184, 1
        %s763 = scalar_lea.sflag [#allocation4], %s762
        %s764 = sand.u32 %s184, 1
        %s765 = smul.addr %s764, 8
        %s766 = scalar_lea.vmem [#allocation5], %s765
        // Predicated region
        $region53: #{tpu_custom_call.1} parent=47 // pred_check
          %p767 = pneg %p194
        $region54: #{tpu_custom_call.1} parent=47 // pred_check_branch
          %769 = sbr.rel (%p767) target = $region56
        $region55: #{tpu_custom_call.1} parent=47 // pred_region
          %s771 = ssub.s32 128, 128
          %772 = vsyncadd %s763, %s771
          %s773 = smul.addr %s24, 128
          %s774 = scalar_lea.hbm %s7, %s773
          %s776 = sshll.u32 %s766, 4
          %s777 = int_to_ptr.vmem [resolvable:$true] %s776
          %779 = dma.vmem_to_hbm [thread:$0]  %s777, 128, %s774, %s763
        $region56: #{tpu_custom_call.1} parent=47 // pred_fallthru
          _
      $region48: #{tpu_custom_call.1} parent=5 // pred_fallthru
        _
      %p780 = scmp.le.s32.totalorder 2, %s19
      // Predicated region
      $region57: #{tpu_custom_call.1} parent=5 // pred_check
        %p781 = pneg %p780
      $region58: #{tpu_custom_call.1} parent=5 // pred_check_branch
        %783 = sbr.rel (%p781) target = $region60
      $region59: #{tpu_custom_call.1} parent=5 // pred_region
        %s784 = ssub.s32 %s19, 2
        // Predicated region
        $region61: #{tpu_custom_call.1} parent=59 // pred_check
          %p785 = pneg %p200
        $region62: #{tpu_custom_call.1} parent=59 // pred_check_branch
          %787 = sbr.rel (%p785) target = $region64
        $region63: #{tpu_custom_call.1} parent=59 // pred_region
          %s788 = sand.u32 %s185, 1
          %s789 = scalar_lea.sflag [#allocation4], %s788
          %s790 = sand.u32 %s185, 1
          %s791 = smul.addr %s790, 8
          %s792 = scalar_lea.vmem [#allocation5], %s791
          %793 = dma.done %s789, 128
        $region64: #{tpu_custom_call.1} parent=59 // pred_fallthru
          _
      $region60: #{tpu_custom_call.1} parent=5 // pred_fallthru
        _
    $region6: #{tpu_custom_call.1} parent=1 // loop_footer
      %s23 = sadd.s32 1, %s19
    $region7: #{tpu_custom_call.1} parent=1 // loop_footer_branch
      %18 = sbr.rel target = $region3
    $region8: #{tpu_custom_call.1} parent=1 // loop_exit
      _
    %794 = vsyncpa [#allocation3], 1
    %s795 = scalar_lea.sflag [#allocation3], 1
    %796 = vsyncpa %s795, 1
    %797 = vsyncpa [#allocation4], 1
    %s798 = scalar_lea.sflag [#allocation4], 1
    %799 = vsyncpa %s798, 1

</llo_original>
